<compile_context>
chip_gen: v6e
topology: v6e:2x2x1
jax: 0.10.0
libtpu: 0.0.40
codegen_flags: <defaults>
</compile_context>

<pallas_src>
import random
import functools

import jax
import jax.numpy as jnp
from jax.experimental import pallas as pl
from jax.experimental.pallas import tpu as pltpu


# ----------------------------------------------------------------------------
# Minimal memory bank (the module's constructor argument).  With the test
# labels below every label has >= 2 samples, so the memory-bank positive path
# is never taken -- get_positive is only a fallback.
# ----------------------------------------------------------------------------
class SimpleMemoryBank:
    def get_positive(self, label):
        return None

    def add_samples(self, x, target):
        # TODO(synk): stateful memory-bank update (host-side side effect), not
        # part of the loss compute; intentionally a no-op here.
        pass


def _round_up(x, m):
    return ((x + m - 1) // m) * m


# ----------------------------------------------------------------------------
# VMEM configuration: query the chip when possible, conservative fallback
# (sized for v7x, which has the smallest per-TC VMEM).
# ----------------------------------------------------------------------------
@functools.lru_cache(maxsize=1)
def _vmem_config():
    phys = 64 << 20  # conservative fallback (v7x per-TC VMEM)
    try:
        phys = int(pltpu.get_tpu_info().vmem_capacity_bytes)
    except Exception:
        pass
    budget = min(phys // 3, 40 << 20)        # bytes of VMEM we plan tiles against
    limit = min((phys * 3) // 4, 96 << 20)   # explicit scoped-VMEM limit
    return budget, limit


def _choose_tile_s(num_rows, num_classes, dtype):
    """Dtype-aware tile choice with headroom for in-kernel f32 temporaries."""
    itemsize = jnp.dtype(dtype).itemsize
    sublane_mult = max(8, 32 // itemsize)          # 8 f32, 16 bf16, 32 int8/fp8
    c_lanes = _round_up(max(num_classes, 1), 128)
    budget, _ = _vmem_config()
    per_row = (2 * c_lanes * itemsize              # double-buffered summed input
               + 2 * c_lanes * 4                   # in-kernel f32 temporaries
               + 4 * 128 * 4)                      # correct + nll narrow blocks
    max_rows = max(int(budget // per_row), sublane_mult)
    tile = min(num_rows, 1024, max_rows)
    if tile < num_rows:
        tile = max(sublane_mult, (tile // sublane_mult) * sublane_mult)
    return tile


# ----------------------------------------------------------------------------
# Pallas kernel: per-set NLL from pre-summed logits.
#   summed_ref  : [TILE_S, C]  (input dtype; cast to f32 in-kernel so bf16
#                               inputs travel at half the DMA bytes)
#   correct_ref : [TILE_S, 1]  correct-class summed logit
#   nll_ref     : [TILE_S, 1]  output per-set NLL (f32)
# ----------------------------------------------------------------------------
def _oko_nll_kernel(summed_ref, correct_ref, nll_ref):
    s = summed_ref[...].astype(jnp.float32)                      # [T, C]
    m = jnp.max(s, axis=-1, keepdims=True)                       # [T, 1]
    lse = m + jnp.log(jnp.sum(jnp.exp(s - m), axis=-1, keepdims=True))
    nll_ref[...] = lse - correct_ref[...].astype(jnp.float32)


def oko_nll_pallas(summed, correct):
    """summed: [Sb, C], correct: [Sb, 1] -> per-set NLL [Sb, 1] (f32)."""
    Sb, C = summed.shape
    tile_s = _choose_tile_s(Sb, C, summed.dtype)
    num_tiles = pl.cdiv(Sb, tile_s)
    _, vmem_limit = _vmem_config()
    row_map = lambda i: (i, 0)

    return pl.pallas_call(
        _oko_nll_kernel,
        out_shape=jax.ShapeDtypeStruct((Sb, 1), jnp.float32),
        grid_spec=pltpu.PrefetchScalarGridSpec(
            num_scalar_prefetch=0,
            grid=(num_tiles,),
            in_specs=[
                pl.BlockSpec((tile_s, C), row_map),   # summed logits
                pl.BlockSpec((tile_s, 1), row_map),   # correct-class logit
            ],
            out_specs=pl.BlockSpec((tile_s, 1), row_map),
        ),
        compiler_params=pltpu.CompilerParams(
            dimension_semantics=("parallel",),        # independent tiles -> 2 TCs on v7x
            vmem_limit_bytes=vmem_limit),
    )(summed, correct)


# ----------------------------------------------------------------------------
# OkoSetLoss forward (single-device path of the PyTorch module).
# ----------------------------------------------------------------------------
class OkoSetLoss:
    def __init__(self, memory_bank, seed=0):
        self.memory_bank = memory_bank
        self._rng = random.Random(seed)  # deterministic triplet sampling

    def forward(self, x, target):
        # x: [B, num_classes] logits, target: [B] int labels.
        all_x = x
        all_target = target
        global_batch_size = all_x.shape[0]

        # --- host-side set formation (mirrors the PyTorch code) -------------
        all_targets_np = [int(v) for v in jax.device_get(all_target)]
        label_to_indices = {}
        for idx, lbl in enumerate(all_targets_np):
            label_to_indices.setdefault(lbl, []).append(idx)

        local_batch_size = x.shape[0]
        start_idx, end_idx = 0, local_batch_size  # rank 0, world_size 1

        anchor_indices, positive_indices, negative_indices = [], [], []
        for anchor_idx in range(global_batch_size):
            anchor_label = all_targets_np[anchor_idx]
            positive_pool = [i for i in label_to_indices[anchor_label]
                             if i != anchor_idx]
            negative_pool = []
            for lbl, idxs in label_to_indices.items():
                if lbl != anchor_label:
                    negative_pool.extend(idxs)
            if len(negative_pool) == 0:
                continue
            negative_idx = self._rng.choice(negative_pool)
            if len(positive_pool) == 0:
                mb_pos = self.memory_bank.get_positive(anchor_label)
                if mb_pos is None:
                    continue
                anchor_indices.append(anchor_idx)
                positive_indices.append(-1)
                negative_indices.append(negative_idx)
            else:
                positive_idx = self._rng.choice(positive_pool)
                anchor_indices.append(anchor_idx)
                positive_indices.append(positive_idx)
                negative_indices.append(negative_idx)

        local_mask = [start_idx <= a < end_idx for a in anchor_indices]
        if not any(local_mask):
            return jnp.float32(0.0)

        anchor_indices = [a for a, m in zip(anchor_indices, local_mask) if m]
        positive_indices = [p for p, m in zip(positive_indices, local_mask) if m]
        negative_indices = [n for n, m in zip(negative_indices, local_mask) if m]
        num_sets = len(anchor_indices)
        print(f"num sets: {num_sets}")

        # --- fixed-size bucket (= global batch size) to avoid per-step -------
        # --- recompilation of the Pallas kernel ------------------------------
        bucket = global_batch_size              # num_sets <= global_batch_size
        pad = bucket - num_sets
        a_idx = anchor_indices + [0] * pad
        p_idx = positive_indices + [0] * pad
        n_idx = negative_indices + [0] * pad
        valid = [1.0] * num_sets + [0.0] * pad

        a_t = jnp.asarray(a_idx, dtype=jnp.int32)
        p_t = jnp.asarray(p_idx, dtype=jnp.int32)
        n_t = jnp.asarray(n_idx, dtype=jnp.int32)
        mask = jnp.asarray(valid, dtype=jnp.float32).reshape(bucket, 1)

        # --- XLA glue: fused gather + add, single [bucket, C] array ----------
        anchor_logits = jnp.take(all_x, a_t, axis=0)
        negative_logits = jnp.take(all_x, n_t, axis=0)
        pos_rows = jnp.take(all_x, jnp.maximum(p_t, 0), axis=0)
        # TODO(synk): memory-bank positives (index -1) are substituted with
        # zero rows; true memory-bank logits are stateful host data and are
        # never exercised by the synthetic test labels.
        positive_logits = jnp.where((p_t >= 0)[:, None], pos_rows,
                                    jnp.zeros_like(pos_rows))
        summed = anchor_logits + positive_logits + negative_logits  # [bucket, C]

        tgt = jnp.take(all_target.astype(jnp.int32), a_t)           # [bucket]
        correct = jnp.take_along_axis(summed, tgt[:, None], axis=1)  # [bucket, 1]

        # --- Pallas kernel: per-set NLL, then masked mean in XLA -------------
        nll = oko_nll_pallas(summed, correct)                        # [bucket, 1]
        loss = jnp.sum(nll * mask) / jnp.sum(mask)

        self.memory_bank.add_samples(x, target)
        return loss


# ----------------------------------------------------------------------------
# Self-test
# ----------------------------------------------------------------------------
if __name__ == "__main__":
    key = jax.random.PRNGKey(0)
    batch, num_classes = 8, 32
    x = jax.random.normal(key, (batch, num_classes), dtype=jnp.float32)
    # Every label appears twice -> positives always available in-batch.
    target = jnp.array([0, 0, 1, 1, 2, 2, 3, 3], dtype=jnp.int32)

    loss_mod = OkoSetLoss(SimpleMemoryBank(), seed=0)
    loss = loss_mod.forward(x, target)
    loss = jax.block_until_ready(loss)

    # Pure-JAX reference (same deterministic triplet sampling, same RNG order).
    rng = random.Random(0)
    labels = [int(v) for v in jax.device_get(target)]
    l2i = {}
    for i, l in enumerate(labels):
        l2i.setdefault(l, []).append(i)
    anchors, poss, negs = [], [], []
    for a in range(batch):
        al = labels[a]
        ppool = [i for i in l2i[al] if i != a]
        npool = [i for l, idxs in l2i.items() if l != al for i in idxs]
        if not npool:
            continue
        nidx = rng.choice(npool)
        if not ppool:
            continue
        pidx = rng.choice(ppool)
        anchors.append(a); poss.append(pidx); negs.append(nidx)
    summed = (x[jnp.array(anchors)] + x[jnp.array(poss)] + x[jnp.array(negs)])
    tgt = target[jnp.array(anchors)]
    logz = jax.nn.logsumexp(summed.astype(jnp.float32), axis=-1)
    ref = jnp.mean(logz - summed[jnp.arange(len(anchors)), tgt].astype(jnp.float32))

    assert jnp.allclose(loss, ref, rtol=1e-5, atol=1e-5), (loss, ref)
    print("KERNEL_OK")
</pallas_src>

<mosaic_0001>
module attributes {stable_mosaic.version = 11 : i64} {
  func.func @_oko_nll_kernel(%arg0: i32, %arg1: memref<8x32xf32, #tpu.memory_space<vmem>>, %arg2: memref<8x1xf32, #tpu.memory_space<vmem>>, %arg3: memref<8x1xf32, #tpu.memory_space<vmem>>) attributes {dimension_semantics = [#tpu.dimension_semantics<parallel>], iteration_bounds = array<i64: 1>, scalar_prefetch = 0 : i64, scratch_operands = 0 : i64, tpu.core_type = #tpu.core_type<tc>, window_params = [{transform_indices = @transform_0, window_bounds = array<i64: 8, 32>}, {transform_indices = @transform_1, window_bounds = array<i64: 8, 1>}, {transform_indices = @transform_2, window_bounds = array<i64: 8, 1>}]} {
    %c0 = arith.constant 0 : index
    %c0_0 = arith.constant 0 : index
    %0 = vector.load %arg1[%c0, %c0_0] : memref<8x32xf32, #tpu.memory_space<vmem>>, vector<8x32xf32>
    %cst = arith.constant dense<0xFF800000> : vector<8xf32>
    %1 = vector.multi_reduction <maximumf>, %0, %cst [1] : vector<8x32xf32> to vector<8xf32>
    %2 = vector.shape_cast %1 : vector<8xf32> to vector<8x1xf32>
    %3 = vector.broadcast %2 : vector<8x1xf32> to vector<8x32xf32>
    %4 = arith.subf %0, %3 : vector<8x32xf32>
    %5 = math.exp %4 : vector<8x32xf32>
    %cst_1 = arith.constant dense<0.000000e+00> : vector<8xf32>
    %6 = vector.multi_reduction <add>, %5, %cst_1 [1] : vector<8x32xf32> to vector<8xf32>
    %7 = vector.shape_cast %6 : vector<8xf32> to vector<8x1xf32>
    %8 = math.log %7 : vector<8x1xf32>
    %9 = arith.addf %2, %8 : vector<8x1xf32>
    %c0_2 = arith.constant 0 : index
    %c0_3 = arith.constant 0 : index
    %10 = vector.load %arg2[%c0_2, %c0_3] : memref<8x1xf32, #tpu.memory_space<vmem>>, vector<8x1xf32>
    %11 = arith.subf %9, %10 : vector<8x1xf32>
    %c0_4 = arith.constant 0 : index
    %c0_5 = arith.constant 0 : index
    %12 = vector.load %arg3[%c0_4, %c0_5] : memref<8x1xf32, #tpu.memory_space<vmem>>, vector<8x1xf32>
    tpu.vector_store %arg3[%c0_4, %c0_5], %11 {strides = array<i32>} : memref<8x1xf32, #tpu.memory_space<vmem>>, vector<8x1xf32>,
    return
  }
  func.func @transform_0(%arg0: i32) -> (i32, i32) {
    %c0_i32 = arith.constant 0 : i32
    %c0_i32_0 = arith.constant 0 : i32
    return %arg0, %c0_i32 : i32, i32
  }
  func.func @transform_1(%arg0: i32) -> (i32, i32) {
    %c0_i32 = arith.constant 0 : i32
    %c0_i32_0 = arith.constant 0 : i32
    return %arg0, %c0_i32 : i32, i32
  }
  func.func @transform_2(%arg0: i32) -> (i32, i32) {
    %c0_i32 = arith.constant 0 : i32
    %c0_i32_0 = arith.constant 0 : i32
    return %arg0, %c0_i32 : i32, i32
  }
}

</mosaic_0001>

<llo_original>
// kernel: tpu_custom_call.1
$region0: #{tpu_custom_call.1}
  #allocation0 [shape = 'u32[]', space=smem, size = 0x4, offset = 0x4, fixed_abs, tag = 'smem constant byte address 0x4 - core index']
  #allocation1 [shape = 'u32[144,128]{1,0:T(1,128)}', space=vmem, size = 0x12000, scoped, tag = 'internal scratch']
  %s0 = inlined_call_operand.vmem [shape: f32[8,32], index: 0, kind: input, shape index: {}]
  %s1 = inlined_call_operand.vmem [shape: f32[8,1], index: 1, kind: input, shape index: {}]
  %s2 = inlined_call_operand.vmem [shape: f32[8,1], index: 2, kind: output, shape index: {}]
  %s3 = sld [smem:[#allocation0]]
  $region18: #{tpu_custom_call.1} parent=0
    _
  %s5 = ssub.s32 1, %s3
  %s6 = scalar_select 0, %s5, %s3
  // Predicated region
  $region2: #{tpu_custom_call.1} parent=0 // pred_check
    _
  $region3: #{tpu_custom_call.1} parent=0 // pred_check_branch
    %8 = sbr.rel (0) target = $region5
  $region4: #{tpu_custom_call.1} parent=0 // pred_region
    _
  $region5: #{tpu_custom_call.1} parent=0 // pred_fallthru
    _
  // Predicated region
  $region6: #{tpu_custom_call.1} parent=0 // pred_check
    _
  $region7: #{tpu_custom_call.1} parent=0 // pred_check_branch
    %10 = sbr.rel (0) target = $region9
  $region8: #{tpu_custom_call.1} parent=0 // pred_region
    _
  $region9: #{tpu_custom_call.1} parent=0 // pred_fallthru
    _
  %v11 = vld [vmem:[%s0] sm:$0xff]
  %vm12 = vcmask 261120
  %v13 = vsel %vm12, %v11, -inf
  %14 = vmax.xlane.f32.xlu0 %v13
  %v15 = vpop.xlane.xlu0 %14
  %v16 = vsub.f32 %v11, %v15
  %v17 = vmul.f32 %v16, 1.442695
  %v18 = vpow.pop %v17
  %v19 = vsel %vm12, %v18, 0.0
  %20 = vadd.xlane.f32.xlu0 %v19
  %v21 = vpop.xlane.xlu0 %20
  %v22 = vlog2.pop %v21
  %v23 = vmul.f32 %v22, 0.6931472
  %v24 = vadd.f32 %v15, %v23
  %v25 = vld [vmem:[%s1] sm:$0xff]
  %v26 = vsub.f32 %v24, %v25
  %vm27 = vcmask 7168
  %28 = vst.msk [vmem:[%s2] sm:$0xff] %vm27, %v26
  // Predicated region
  $region10: #{tpu_custom_call.1} parent=0 // pred_check
    _
  $region11: #{tpu_custom_call.1} parent=0 // pred_check_branch
    %30 = sbr.rel (0) target = $region13
  $region12: #{tpu_custom_call.1} parent=0 // pred_region
    _
  $region13: #{tpu_custom_call.1} parent=0 // pred_fallthru
    _
  // Predicated region
  $region14: #{tpu_custom_call.1} parent=0 // pred_check
    _
  $region15: #{tpu_custom_call.1} parent=0 // pred_check_branch
    %32 = sbr.rel (0) target = $region17
  $region16: #{tpu_custom_call.1} parent=0 // pred_region
    _
  $region17: #{tpu_custom_call.1} parent=0 // pred_fallthru
    _

</llo_original>
